<compile_context>
chip_gen: v5e
topology: v5e:2x2
jax: 0.10.0
libtpu: 0.0.40
codegen_flags: <defaults>
</compile_context>

<pallas_src>
import jax
import jax.numpy as jnp
from jax.experimental import pallas as pl
from jax.experimental.pallas import tpu as pltpu


def _make_ncf_kernel(num_hidden_layers):
    """Kernel: `num_hidden_layers` (Linear+ReLU) layers + Linear(...,1)+Sigmoid.

    Activations are [features, tile_batch]; weights are PyTorch-shaped
    (out_features, in_features); biases are (out_features, 1) f32 columns.
    The first layer consumes the user/item slabs separately via a split W0.
    """

    def kernel(ue_ref, ie_ref, *refs):
        # refs = (w0u, w0i, b0, w1, b1, ..., w_final, b_final, out_ref)
        out_ref = refs[-1]
        prefs = refs[:-1]
        cdt = ue_ref.dtype  # compute/stream dtype for the MXU inputs

        # First hidden layer: relu(W0u @ ue + W0i @ ie + b0), f32 accumulate.
        w0u = prefs[0][...]
        w0i = prefs[1][...]
        b0 = prefs[2][...]
        h = jnp.dot(w0u, ue_ref[...], preferred_element_type=jnp.float32)
        h = h + jnp.dot(w0i, ie_ref[...], preferred_element_type=jnp.float32)
        h = jnp.maximum(h + b0, 0.0).astype(cdt)

        # Remaining hidden layers: h = relu(W @ h + b).
        idx = 3
        for _ in range(num_hidden_layers - 1):
            w = prefs[idx][...]
            b = prefs[idx + 1][...]
            idx += 2
            h = jnp.dot(w, h, preferred_element_type=jnp.float32) + b
            h = jnp.maximum(h, 0.0).astype(cdt)

        # Final Linear(layers[-1], 1) + Sigmoid -> lane-dense (1, tb) row.
        wf = prefs[idx][...]
        bf = prefs[idx + 1][...]
        logits = jnp.dot(wf, h, preferred_element_type=jnp.float32) + bf
        out_ref[...] = (1.0 / (1.0 + jnp.exp(-logits))).astype(out_ref.dtype)

    return kernel


def ncf_forward(users, items, params, *, block_batch=16384,
                stream_dtype=jnp.bfloat16):
    """Pallas NCF forward.

    users, items : int32 [B] index vectors
    params : dict with
        'user_emb' [num_users, E], 'item_emb' [num_items, E],
        'weights'  list of (out, in) matrices (hidden layers then final head),
        'biases'   list of (out, 1) columns   (hidden layers then final head).
    returns float32 [B, 1] sigmoid scores, matching the PyTorch module
    (exactly for stream_dtype=float32, to bf16 precision otherwise).
    """
    weights = params["weights"]
    biases = params["biases"]
    E = params["user_emb"].shape[1]
    B = users.shape[0]

    # --- wrapper glue: gather straight into the transposed [E, B] layout.
    # Tables are (cheaply) transposed/cast once; the big activation slabs are
    # produced lane-dense with no concat and no big transpose to materialize.
    ue_t = jnp.take(params["user_emb"].T.astype(stream_dtype), users, axis=1)
    ie_t = jnp.take(params["item_emb"].T.astype(stream_dtype), items, axis=1)

    # --- batch tiling: multiple of 128, clamped to the batch, >=2 tiles when
    # the batch is big enough (megacore), padded (no divisibility assert).
    b_ceil = pl.cdiv(B, 128) * 128
    tb = max(128, (int(block_batch) // 128) * 128)
    tb = min(tb, b_ceil)
    if B > 256 and pl.cdiv(B, tb) == 1 and tb >= 256:
        tb = max(128, (tb // 2 // 128) * 128)     # ensure >=2 grid steps (v7x)
    n_tiles = pl.cdiv(B, tb)
    b_pad = n_tiles * tb
    if b_pad != B:
        ue_t = jnp.pad(ue_t, ((0, 0), (0, b_pad - B)))
        ie_t = jnp.pad(ie_t, ((0, 0), (0, b_pad - B)))

    num_hidden = len(weights) - 1
    kernel = _make_ncf_kernel(num_hidden)

    # Activation slabs stream over batch; weights/biases are resident
    # (constant block index => no per-step re-DMA).  Weights cast to the
    # stream/compute dtype (bf16 MXU path); biases stay f32.
    in_specs = [
        pl.BlockSpec((E, tb), lambda i: (0, i)),
        pl.BlockSpec((E, tb), lambda i: (0, i)),
    ]
    w0 = weights[0]
    w0u = w0[:, :E].astype(stream_dtype)
    w0i = w0[:, E:].astype(stream_dtype)
    flat_params = [w0u, w0i, biases[0].astype(jnp.float32)]
    in_specs += [
        pl.BlockSpec(w0u.shape, lambda i: (0, 0)),
        pl.BlockSpec(w0i.shape, lambda i: (0, 0)),
        pl.BlockSpec(biases[0].shape, lambda i: (0, 0)),
    ]
    for w, b in zip(weights[1:], biases[1:]):
        flat_params += [w.astype(stream_dtype), b.astype(jnp.float32)]
        in_specs += [
            pl.BlockSpec(w.shape, lambda i: (0, 0)),
            pl.BlockSpec(b.shape, lambda i: (0, 0)),
        ]

    out = pl.pallas_call(
        kernel,
        out_shape=jax.ShapeDtypeStruct((1, b_pad), jnp.float32),
        grid_spec=pltpu.PrefetchScalarGridSpec(
            num_scalar_prefetch=0,
            grid=(n_tiles,),
            in_specs=in_specs,
            out_specs=pl.BlockSpec((1, tb), lambda i: (0, i)),
        ),
        compiler_params=pltpu.CompilerParams(
            dimension_semantics=("parallel",),
        ),
    )(ue_t, ie_t, *flat_params)

    return out[0, :B][:, None]


def init_params(key, num_users, num_items, emb_size, layers):
    """Deterministic synthetic init; shapes match the PyTorch module.

    Linear weights are kept in PyTorch (out, in) orientation; biases are
    stored as (out, 1) columns for the transposed-activation kernel layout.
    """
    keys = jax.random.split(key, 2 + 2 * (len(layers) + 1))
    params = {
        "user_emb": jax.random.normal(keys[0], (num_users, emb_size), jnp.float32) * 0.1,
        "item_emb": jax.random.normal(keys[1], (num_items, emb_size), jnp.float32) * 0.1,
    }
    dims = [emb_size * 2] + list(layers) + [1]
    weights, biases = [], []
    ki = 2
    for d_in, d_out in zip(dims[:-1], dims[1:]):
        scale = 1.0 / jnp.sqrt(jnp.float32(d_in))
        w = jax.random.uniform(keys[ki], (d_out, d_in), jnp.float32, -scale, scale)
        b = jax.random.uniform(keys[ki + 1], (d_out, 1), jnp.float32, -scale, scale)
        weights.append(w)
        biases.append(b)
        ki += 2
    params["weights"] = weights
    params["biases"] = biases
    return params


def ncf_reference(users, items, params):
    """Pure-JAX f32 reference of the PyTorch forward for verification."""
    ue = jnp.take(params["user_emb"], users, axis=0)
    ie = jnp.take(params["item_emb"], items, axis=0)
    x = jnp.concatenate([ue, ie], axis=-1)              # [B, 2E]
    ws, bs = params["weights"], params["biases"]
    for w, b in zip(ws[:-1], bs[:-1]):
        x = jnp.maximum(x @ w.T + b[:, 0], 0.0)
    logits = x @ ws[-1].T + bs[-1][:, 0]                 # [B, 1]
    return jax.nn.sigmoid(logits)


if __name__ == "__main__":
    # Small shapes consistent with the module.
    num_users, num_items = 64, 96
    emb_size = 16
    layers = [32, 16]
    batch = 300   # not a multiple of 128 -> exercises padding + multi-tile grid

    key = jax.random.PRNGKey(0)
    kp, ku, ki = jax.random.split(key, 3)
    params = init_params(kp, num_users, num_items, emb_size, layers)
    users = jax.random.randint(ku, (batch,), 0, num_users, dtype=jnp.int32)
    items = jax.random.randint(ki, (batch,), 0, num_items, dtype=jnp.int32)

    ref = jax.block_until_ready(ncf_reference(users, items, params))

    # 1) f32 streaming path, small tile -> multi-tile grid; exact-ish check.
    out_f32 = jax.block_until_ready(
        ncf_forward(users, items, params, block_batch=128,
                    stream_dtype=jnp.float32))
    assert out_f32.shape == (batch, 1), out_f32.shape
    assert jnp.allclose(out_f32, ref, atol=2e-5, rtol=2e-5)

    # 2) production default: bf16 stream, auto-clamped/split tile.
    out_bf16 = jax.block_until_ready(ncf_forward(users, items, params))
    assert out_bf16.shape == (batch, 1), out_bf16.shape
    assert jnp.allclose(out_bf16, ref, atol=2e-2, rtol=2e-2)

    print("KERNEL_OK")
</pallas_src>

<mosaic_0001>
module attributes {stable_mosaic.version = 11 : i64} {
  func.func @kernel(%arg0: i32, %arg1: memref<16x128xf32, #tpu.memory_space<vmem>>, %arg2: memref<16x128xf32, #tpu.memory_space<vmem>>, %arg3: memref<32x16xf32, #tpu.memory_space<vmem>>, %arg4: memref<32x16xf32, #tpu.memory_space<vmem>>, %arg5: memref<32x1xf32, #tpu.memory_space<vmem>>, %arg6: memref<16x32xf32, #tpu.memory_space<vmem>>, %arg7: memref<16x1xf32, #tpu.memory_space<vmem>>, %arg8: memref<1x16xf32, #tpu.memory_space<vmem>>, %arg9: memref<1x1xf32, #tpu.memory_space<vmem>>, %arg10: memref<1x128xf32, #tpu.memory_space<vmem>>) attributes {dimension_semantics = [#tpu.dimension_semantics<parallel>], iteration_bounds = array<i64: 3>, scalar_prefetch = 0 : i64, scratch_operands = 0 : i64, tpu.core_type = #tpu.core_type<tc>, window_params = [{transform_indices = @transform_0, window_bounds = array<i64: 16, 128>}, {transform_indices = @transform_1, window_bounds = array<i64: 16, 128>}, {pipeline_mode = #tpu.pipeline_mode<synchronous>, transform_indices = @transform_2, window_bounds = array<i64: 32, 16>}, {pipeline_mode = #tpu.pipeline_mode<synchronous>, transform_indices = @transform_3, window_bounds = array<i64: 32, 16>}, {pipeline_mode = #tpu.pipeline_mode<synchronous>, transform_indices = @transform_4, window_bounds = array<i64: 32, 1>}, {pipeline_mode = #tpu.pipeline_mode<synchronous>, transform_indices = @transform_5, window_bounds = array<i64: 16, 32>}, {pipeline_mode = #tpu.pipeline_mode<synchronous>, transform_indices = @transform_6, window_bounds = array<i64: 16, 1>}, {pipeline_mode = #tpu.pipeline_mode<synchronous>, transform_indices = @transform_7, window_bounds = array<i64: 1, 16>}, {pipeline_mode = #tpu.pipeline_mode<synchronous>, transform_indices = @transform_8, window_bounds = array<i64: 1, 1>}, {transform_indices = @transform_9, window_bounds = array<i64: 1, 128>}]} {
    %c0 = arith.constant 0 : index
    %c0_0 = arith.constant 0 : index
    %0 = vector.load %arg3[%c0, %c0_0] : memref<32x16xf32, #tpu.memory_space<vmem>>, vector<32x16xf32>
    %c0_1 = arith.constant 0 : index
    %c0_2 = arith.constant 0 : index
    %1 = vector.load %arg4[%c0_1, %c0_2] : memref<32x16xf32, #tpu.memory_space<vmem>>, vector<32x16xf32>
    %c0_3 = arith.constant 0 : index
    %c0_4 = arith.constant 0 : index
    %2 = vector.load %arg5[%c0_3, %c0_4] : memref<32x1xf32, #tpu.memory_space<vmem>>, vector<32x1xf32>
    %c0_5 = arith.constant 0 : index
    %c0_6 = arith.constant 0 : index
    %3 = vector.load %arg1[%c0_5, %c0_6] : memref<16x128xf32, #tpu.memory_space<vmem>>, vector<16x128xf32>
    %cst = arith.constant dense<0.000000e+00> : vector<32x128xf32>
    %4 = tpu.matmul %0, %3, %cst {dimension_numbers = #tpu.dot_dimension_numbers<[1], [0], [0], [1], [0, 0, 1, 1], [], []>} : vector<32x16xf32>, vector<16x128xf32>, vector<32x128xf32> -> vector<32x128xf32>
    %c0_7 = arith.constant 0 : index
    %c0_8 = arith.constant 0 : index
    %5 = vector.load %arg2[%c0_7, %c0_8] : memref<16x128xf32, #tpu.memory_space<vmem>>, vector<16x128xf32>
    %cst_9 = arith.constant dense<0.000000e+00> : vector<32x128xf32>
    %6 = tpu.matmul %1, %5, %cst_9 {dimension_numbers = #tpu.dot_dimension_numbers<[1], [0], [0], [1], [0, 0, 1, 1], [], []>} : vector<32x16xf32>, vector<16x128xf32>, vector<32x128xf32> -> vector<32x128xf32>
    %7 = arith.addf %4, %6 : vector<32x128xf32>
    %8 = vector.broadcast %2 : vector<32x1xf32> to vector<32x128xf32>
    %9 = arith.addf %7, %8 : vector<32x128xf32>
    %cst_10 = arith.constant 0.000000e+00 : f32
    %10 = vector.broadcast %cst_10 : f32 to vector<32x128xf32>
    %11 = arith.maximumf %9, %10 : vector<32x128xf32>
    %c0_11 = arith.constant 0 : index
    %c0_12 = arith.constant 0 : index
    %12 = vector.load %arg6[%c0_11, %c0_12] : memref<16x32xf32, #tpu.memory_space<vmem>>, vector<16x32xf32>
    %c0_13 = arith.constant 0 : index
    %c0_14 = arith.constant 0 : index
    %13 = vector.load %arg7[%c0_13, %c0_14] : memref<16x1xf32, #tpu.memory_space<vmem>>, vector<16x1xf32>
    %cst_15 = arith.constant dense<0.000000e+00> : vector<16x128xf32>
    %14 = tpu.matmul %12, %11, %cst_15 {dimension_numbers = #tpu.dot_dimension_numbers<[1], [0], [0], [1], [0, 0, 1, 1], [], []>} : vector<16x32xf32>, vector<32x128xf32>, vector<16x128xf32> -> vector<16x128xf32>
    %15 = vector.broadcast %13 : vector<16x1xf32> to vector<16x128xf32>
    %16 = arith.addf %14, %15 : vector<16x128xf32>
    %cst_16 = arith.constant 0.000000e+00 : f32
    %17 = vector.broadcast %cst_16 : f32 to vector<16x128xf32>
    %18 = arith.maximumf %16, %17 : vector<16x128xf32>
    %c0_17 = arith.constant 0 : index
    %c0_18 = arith.constant 0 : index
    %19 = vector.load %arg8[%c0_17, %c0_18] : memref<1x16xf32, #tpu.memory_space<vmem>>, vector<1x16xf32>
    %c0_19 = arith.constant 0 : index
    %c0_20 = arith.constant 0 : index
    %20 = vector.load %arg9[%c0_19, %c0_20] : memref<1x1xf32, #tpu.memory_space<vmem>>, vector<1x1xf32>
    %cst_21 = arith.constant dense<0.000000e+00> : vector<1x128xf32>
    %21 = tpu.matmul %19, %18, %cst_21 {dimension_numbers = #tpu.dot_dimension_numbers<[1], [0], [0], [1], [0, 0, 1, 1], [], []>} : vector<1x16xf32>, vector<16x128xf32>, vector<1x128xf32> -> vector<1x128xf32>
    %22 = vector.broadcast %20 : vector<1x1xf32> to vector<1x128xf32>
    %23 = arith.addf %21, %22 : vector<1x128xf32>
    %cst_22 = arith.constant 0.000000e+00 : f32
    %24 = vector.broadcast %cst_22 : f32 to vector<1x128xf32>
    %25 = arith.subf %24, %23 : vector<1x128xf32>
    %26 = math.exp %25 : vector<1x128xf32>
    %cst_23 = arith.constant 1.000000e+00 : f32
    %27 = vector.broadcast %cst_23 : f32 to vector<1x128xf32>
    %28 = arith.addf %27, %26 : vector<1x128xf32>
    %cst_24 = arith.constant 1.000000e+00 : f32
    %29 = vector.broadcast %cst_24 : f32 to vector<1x128xf32>
    %30 = arith.divf %29, %28 : vector<1x128xf32>
    %c0_25 = arith.constant 0 : index
    %c0_26 = arith.constant 0 : index
    %31 = vector.load %arg10[%c0_25, %c0_26] : memref<1x128xf32, #tpu.memory_space<vmem>>, vector<1x128xf32>
    tpu.vector_store %arg10[%c0_25, %c0_26], %30 {strides = array<i32>} : memref<1x128xf32, #tpu.memory_space<vmem>>, vector<1x128xf32>,
    return
  }
  func.func @transform_0(%arg0: i32) -> (i32, i32) {
    %c0_i32 = arith.constant 0 : i32
    %c0_i32_0 = arith.constant 0 : i32
    return %c0_i32, %arg0 : i32, i32
  }
  func.func @transform_1(%arg0: i32) -> (i32, i32) {
    %c0_i32 = arith.constant 0 : i32
    %c0_i32_0 = arith.constant 0 : i32
    return %c0_i32, %arg0 : i32, i32
  }
  func.func @transform_2(%arg0: i32) -> (i32, i32) {
    %c0_i32 = arith.constant 0 : i32
    %c0_i32_0 = arith.constant 0 : i32
    %c0_i32_1 = arith.constant 0 : i32
    return %c0_i32, %c0_i32_0 : i32, i32
  }
  func.func @transform_3(%arg0: i32) -> (i32, i32) {
    %c0_i32 = arith.constant 0 : i32
    %c0_i32_0 = arith.constant 0 : i32
    %c0_i32_1 = arith.constant 0 : i32
    return %c0_i32, %c0_i32_0 : i32, i32
  }
  func.func @transform_4(%arg0: i32) -> (i32, i32) {
    %c0_i32 = arith.constant 0 : i32
    %c0_i32_0 = arith.constant 0 : i32
    %c0_i32_1 = arith.constant 0 : i32
    return %c0_i32, %c0_i32_0 : i32, i32
  }
  func.func @transform_5(%arg0: i32) -> (i32, i32) {
    %c0_i32 = arith.constant 0 : i32
    %c0_i32_0 = arith.constant 0 : i32
    %c0_i32_1 = arith.constant 0 : i32
    return %c0_i32, %c0_i32_0 : i32, i32
  }
  func.func @transform_6(%arg0: i32) -> (i32, i32) {
    %c0_i32 = arith.constant 0 : i32
    %c0_i32_0 = arith.constant 0 : i32
    %c0_i32_1 = arith.constant 0 : i32
    return %c0_i32, %c0_i32_0 : i32, i32
  }
  func.func @transform_7(%arg0: i32) -> (i32, i32) {
    %c0_i32 = arith.constant 0 : i32
    %c0_i32_0 = arith.constant 0 : i32
    %c0_i32_1 = arith.constant 0 : i32
    return %c0_i32, %c0_i32_0 : i32, i32
  }
  func.func @transform_8(%arg0: i32) -> (i32, i32) {
    %c0_i32 = arith.constant 0 : i32
    %c0_i32_0 = arith.constant 0 : i32
    %c0_i32_1 = arith.constant 0 : i32
    return %c0_i32, %c0_i32_0 : i32, i32
  }
  func.func @transform_9(%arg0: i32) -> (i32, i32) {
    %c0_i32 = arith.constant 0 : i32
    %c0_i32_0 = arith.constant 0 : i32
    return %c0_i32, %arg0 : i32, i32
  }
}

</mosaic_0001>

<llo_original>
// kernel: tpu_custom_call.1
$region0: #{tpu_custom_call.1}
  #allocation0 [shape = 'u32[]', space=smem, size = 0x4, offset = 0x4, fixed_abs, tag = 'smem constant byte address 0x4 - core index']
  #allocation1 [shape = 'u32[72,128]{1,0:T(1,128)}', space=vmem, size = 0x9000, scoped, tag = 'internal scratch']
  #allocation2 [shape = 'f32[1,1]{1,0:T(1,128)S(1)}', space=vmem, size = 0x200, scoped, tag = 'scoped memory for tpu_custom_call.1']
  %s0 = inlined_call_operand.vmem [shape: f32[16,384], index: 0, kind: input, shape index: {}]
  %s1 = inlined_call_operand.vmem [shape: f32[16,384], index: 1, kind: input, shape index: {}]
  %s2 = inlined_call_operand.vmem [shape: f32[32,16], index: 2, kind: input, shape index: {}]
  %s3 = inlined_call_operand.vmem [shape: f32[32,16], index: 3, kind: input, shape index: {}]
  %s4 = inlined_call_operand.vmem [shape: f32[32,1], index: 4, kind: input, shape index: {}]
  %s5 = inlined_call_operand.vmem [shape: f32[16,32], index: 5, kind: input, shape index: {}]
  %s6 = inlined_call_operand.vmem [shape: f32[16,1], index: 6, kind: input, shape index: {}]
  %s7 = inlined_call_operand.vmem [shape: f32[1,16], index: 7, kind: input, shape index: {}]
  %s8 = inlined_call_operand.<no memory space> [shape: f32[1,1], index: 8, kind: input, shape index: {}]
  %s9 = inlined_call_operand.hbm [shape: f32[1,384], index: 9, kind: output, shape index: {}]
  %s10 = sld [smem:[#allocation0]]
  $region145: #{tpu_custom_call.1} parent=0
    _
  %s12 = ssub.s32 1, %s10
  %s13 = scalar_select 0, %s12, %s10
  %v14 = vstv %s8
  %15 = vst [vmem:[#allocation2] sm:$0x1] %v14
  $region1: #{tpu_custom_call.1} parent=0
    #allocation3 [shape = 'u8[16384]{0}', space=vmem, size = 0x4000, scoped, tag = 'input window, operand 0']
    #allocation4 [shape = 'u8[16384]{0}', space=vmem, size = 0x4000, scoped, tag = 'input window, operand 1']
    #allocation5 [shape = 'u8[1024]{0}', space=vmem, size = 0x400, scoped, tag = 'output window, operand 0']
    #allocation6 [shape = 's32[2]{0}', space=sflag, size = 0x8, scoped, tag = 'scoped memory for tpu_custom_call.1']
    %16 = vsyncpa [#allocation6], 0
    %s17 = scalar_lea.sflag [#allocation6], 1
    %18 = vsyncpa %s17, 0
    loop: start=0, step=1, limit=5
    $region2: #{tpu_custom_call.1} parent=1 // loop_pre_header
      _
    $region3: #{tpu_custom_call.1} parent=1 // loop_header
      %s20 = sphi 0, %s24
      %p21 = scmp.ge.s32.totalorder %s20, 5
      %s30 = sphi 0, %s32
      %s33 = sphi 0, %s30
      %s34 = sphi 0, %s33
      %s50 = sphi 0, %s34
      %s56 = sphi 0, %s58
      %s59 = sphi 0, %s56
      %s60 = sphi 0, %s59
      %s76 = sphi 0, %s60
      %s80 = sphi 0, %s80
      %s82 = sphi 0, %s80
      %s83 = sphi 0, %s82
      %s97 = sphi 0, %s83
      %s101 = sphi 0, %s101
      %s103 = sphi 0, %s101
      %s104 = sphi 0, %s103
      %s118 = sphi 0, %s104
      %s122 = sphi 0, %s122
      %s124 = sphi 0, %s122
      %s125 = sphi 0, %s124
      %s139 = sphi 0, %s125
      %s143 = sphi 0, %s143
      %s145 = sphi 0, %s143
      %s146 = sphi 0, %s145
      %s160 = sphi 0, %s146
      %s164 = sphi 0, %s164
      %s166 = sphi 0, %s164
      %s167 = sphi 0, %s166
      %s181 = sphi 0, %s167
      %s185 = sphi 0, %s185
      %s187 = sphi 0, %s185
      %s188 = sphi 0, %s187
      %s202 = sphi 0, %s188
      %s206 = sphi 0, %s206
      %s208 = sphi 0, %s206
      %s209 = sphi 0, %s208
      %s223 = sphi 0, %s209
      %s229 = sphi 0, %s231
      %s232 = sphi 0, %s229
      %s233 = sphi 0, %s232
      %s249 = sphi 0, %s233
    $region4: #{tpu_custom_call.1} parent=1 // loop_header_branch
      %23 = sbr.rel (%p21) target = $region8
    $region5: #{tpu_custom_call.1} parent=1 // loop_body
      %s25 = ssub.s32 %s20, 1
      %s26 = ssub.s32 %s20, 2
      %s27 = sadd.s32 %s20, 1
      %s28 = ssub.s32 %s20, %s27
      %p29 = scmp.eq.s32.totalorder %s28, 0
      %s31 = sadd.s32 %s30, 1
      %s32 = scalar_select %p29, %s30, %s31
      %p35 = pneg %p29
      %p36 = scmp.eq.s32.totalorder %s20, 2
      %p37 = por %p35, %p36
      %p38 = scmp.ne.s32.totalorder %s30, %s33
      %p39 = scmp.eq.s32.totalorder %s20, 0
      %p40 = por %p38, %p39
      %p41 = scmp.ne.s32.totalorder %s30, %s33
      %p42 = scmp.eq.s32.totalorder %s25, 2
      %p43 = por %p41, %p42
      %p44 = scmp.ne.s32.totalorder %s33, %s34
      %p45 = scmp.eq.s32.totalorder %s25, 0
      %p46 = por %p44, %p45
      %p47 = scmp.ne.s32.totalorder %s33, %s34
      %p48 = scmp.eq.s32.totalorder %s26, 2
      %p49 = por %p47, %p48
      %p51 = scmp.ne.s32.totalorder %s34, %s50
      %p52 = scmp.eq.s32.totalorder %s26, 0
      %p53 = por %p51, %p52
      %s54 = ssub.s32 %s20, %s27
      %p55 = scmp.eq.s32.totalorder %s54, 0
      %s57 = sadd.s32 %s56, 1
      %s58 = scalar_select %p55, %s56, %s57
      %p61 = pneg %p55
      %p62 = scmp.eq.s32.totalorder %s20, 2
      %p63 = por %p61, %p62
      %p64 = scmp.ne.s32.totalorder %s56, %s59
      %p65 = scmp.eq.s32.totalorder %s20, 0
      %p66 = por %p64, %p65
      %p67 = scmp.ne.s32.totalorder %s56, %s59
      %p68 = scmp.eq.s32.totalorder %s25, 2
      %p69 = por %p67, %p68
      %p70 = scmp.ne.s32.totalorder %s59, %s60
      %p71 = scmp.eq.s32.totalorder %s25, 0
      %p72 = por %p70, %p71
      %p73 = scmp.ne.s32.totalorder %s59, %s60
      %p74 = scmp.eq.s32.totalorder %s26, 2
      %p75 = por %p73, %p74
      %p77 = scmp.ne.s32.totalorder %s60, %s76
      %p78 = scmp.eq.s32.totalorder %s26, 0
      %p79 = por %p77, %p78
      %s81 = sadd.s32 %s80, 1
      %p84 = scmp.eq.s32.totalorder %s20, 2
      %p85 = scmp.ne.s32.totalorder %s80, %s82
      %p86 = scmp.eq.s32.totalorder %s20, 0
      %p87 = por %p85, %p86
      %p88 = scmp.ne.s32.totalorder %s80, %s82
      %p89 = scmp.eq.s32.totalorder %s25, 2
      %p90 = por %p88, %p89
      %p91 = scmp.ne.s32.totalorder %s82, %s83
      %p92 = scmp.eq.s32.totalorder %s25, 0
      %p93 = por %p91, %p92
      %p94 = scmp.ne.s32.totalorder %s82, %s83
      %p95 = scmp.eq.s32.totalorder %s26, 2
      %p96 = por %p94, %p95
      %p98 = scmp.ne.s32.totalorder %s83, %s97
      %p99 = scmp.eq.s32.totalorder %s26, 0
      %p100 = por %p98, %p99
      %s102 = sadd.s32 %s101, 1
      %p105 = scmp.eq.s32.totalorder %s20, 2
      %p106 = scmp.ne.s32.totalorder %s101, %s103
      %p107 = scmp.eq.s32.totalorder %s20, 0
      %p108 = por %p106, %p107
      %p109 = scmp.ne.s32.totalorder %s101, %s103
      %p110 = scmp.eq.s32.totalorder %s25, 2
      %p111 = por %p109, %p110
      %p112 = scmp.ne.s32.totalorder %s103, %s104
      %p113 = scmp.eq.s32.totalorder %s25, 0
      %p114 = por %p112, %p113
      %p115 = scmp.ne.s32.totalorder %s103, %s104
      %p116 = scmp.eq.s32.totalorder %s26, 2
      %p117 = por %p115, %p116
      %p119 = scmp.ne.s32.totalorder %s104, %s118
      %p120 = scmp.eq.s32.totalorder %s26, 0
      %p121 = por %p119, %p120
      %s123 = sadd.s32 %s122, 1
      %p126 = scmp.eq.s32.totalorder %s20, 2
      %p127 = scmp.ne.s32.totalorder %s122, %s124
      %p128 = scmp.eq.s32.totalorder %s20, 0
      %p129 = por %p127, %p128
      %p130 = scmp.ne.s32.totalorder %s122, %s124
      %p131 = scmp.eq.s32.totalorder %s25, 2
      %p132 = por %p130, %p131
      %p133 = scmp.ne.s32.totalorder %s124, %s125
      %p134 = scmp.eq.s32.totalorder %s25, 0
      %p135 = por %p133, %p134
      %p136 = scmp.ne.s32.totalorder %s124, %s125
      %p137 = scmp.eq.s32.totalorder %s26, 2
      %p138 = por %p136, %p137
      %p140 = scmp.ne.s32.totalorder %s125, %s139
      %p141 = scmp.eq.s32.totalorder %s26, 0
      %p142 = por %p140, %p141
      %s144 = sadd.s32 %s143, 1
      %p147 = scmp.eq.s32.totalorder %s20, 2
      %p148 = scmp.ne.s32.totalorder %s143, %s145
      %p149 = scmp.eq.s32.totalorder %s20, 0
      %p150 = por %p148, %p149
      %p151 = scmp.ne.s32.totalorder %s143, %s145
      %p152 = scmp.eq.s32.totalorder %s25, 2
      %p153 = por %p151, %p152
      %p154 = scmp.ne.s32.totalorder %s145, %s146
      %p155 = scmp.eq.s32.totalorder %s25, 0
      %p156 = por %p154, %p155
      %p157 = scmp.ne.s32.totalorder %s145, %s146
      %p158 = scmp.eq.s32.totalorder %s26, 2
      %p159 = por %p157, %p158
      %p161 = scmp.ne.s32.totalorder %s146, %s160
      %p162 = scmp.eq.s32.totalorder %s26, 0
      %p163 = por %p161, %p162
      %s165 = sadd.s32 %s164, 1
      %p168 = scmp.eq.s32.totalorder %s20, 2
      %p169 = scmp.ne.s32.totalorder %s164, %s166
      %p170 = scmp.eq.s32.totalorder %s20, 0
      %p171 = por %p169, %p170
      %p172 = scmp.ne.s32.totalorder %s164, %s166
      %p173 = scmp.eq.s32.totalorder %s25, 2
      %p174 = por %p172, %p173
      %p175 = scmp.ne.s32.totalorder %s166, %s167
      %p176 = scmp.eq.s32.totalorder %s25, 0
      %p177 = por %p175, %p176
      %p178 = scmp.ne.s32.totalorder %s166, %s167
      %p179 = scmp.eq.s32.totalorder %s26, 2
      %p180 = por %p178, %p179
      %p182 = scmp.ne.s32.totalorder %s167, %s181
      %p183 = scmp.eq.s32.totalorder %s26, 0
      %p184 = por %p182, %p183
      %s186 = sadd.s32 %s185, 1
      %p189 = scmp.eq.s32.totalorder %s20, 2
      %p190 = scmp.ne.s32.totalorder %s185, %s187
      %p191 = scmp.eq.s32.totalorder %s20, 0
      %p192 = por %p190, %p191
      %p193 = scmp.ne.s32.totalorder %s185, %s187
      %p194 = scmp.eq.s32.totalorder %s25, 2
      %p195 = por %p193, %p194
      %p196 = scmp.ne.s32.totalorder %s187, %s188
      %p197 = scmp.eq.s32.totalorder %s25, 0
      %p198 = por %p196, %p197
      %p199 = scmp.ne.s32.totalorder %s187, %s188
      %p200 = scmp.eq.s32.totalorder %s26, 2
      %p201 = por %p199, %p200
      %p203 = scmp.ne.s32.totalorder %s188, %s202
      %p204 = scmp.eq.s32.totalorder %s26, 0
      %p205 = por %p203, %p204
      %s207 = sadd.s32 %s206, 1
      %p210 = scmp.eq.s32.totalorder %s20, 2
      %p211 = scmp.ne.s32.totalorder %s206, %s208
      %p212 = scmp.eq.s32.totalorder %s20, 0
      %p213 = por %p211, %p212
      %p214 = scmp.ne.s32.totalorder %s206, %s208
      %p215 = scmp.eq.s32.totalorder %s25, 2
      %p216 = por %p214, %p215
      %p217 = scmp.ne.s32.totalorder %s208, %s209
      %p218 = scmp.eq.s32.totalorder %s25, 0
      %p219 = por %p217, %p218
      %p220 = scmp.ne.s32.totalorder %s208, %s209
      %p221 = scmp.eq.s32.totalorder %s26, 2
      %p222 = por %p220, %p221
      %p224 = scmp.ne.s32.totalorder %s209, %s223
      %p225 = scmp.eq.s32.totalorder %s26, 0
      %p226 = por %p224, %p225
      %s227 = ssub.s32 %s20, %s27
      %p228 = scmp.eq.s32.totalorder %s227, 0
      %s230 = sadd.s32 %s229, 1
      %s231 = scalar_select %p228, %s229, %s230
      %p234 = pneg %p228
      %p235 = scmp.eq.s32.totalorder %s20, 2
      %p236 = por %p234, %p235
      %p237 = scmp.ne.s32.totalorder %s229, %s232
      %p238 = scmp.eq.s32.totalorder %s20, 0
      %p239 = por %p237, %p238
      %p240 = scmp.ne.s32.totalorder %s229, %s232
      %p241 = scmp.eq.s32.totalorder %s25, 2
      %p242 = por %p240, %p241
      %p243 = scmp.ne.s32.totalorder %s232, %s233
      %p244 = scmp.eq.s32.totalorder %s25, 0
      %p245 = por %p243, %p244
      %p246 = scmp.ne.s32.totalorder %s232, %s233
      %p247 = scmp.eq.s32.totalorder %s26, 2
      %p248 = por %p246, %p247
      %p250 = scmp.ne.s32.totalorder %s233, %s249
      %p251 = scmp.eq.s32.totalorder %s26, 0
      %p252 = por %p250, %p251
      %p253 = scmp.le.s32.totalorder 1, %s20
      %p254 = scmp.lt.s32.totalorder %s20, 4
      %p255 = pnand %p253, %p254
      %p256 = pneg %p255
      // Predicated region
      $region9: #{tpu_custom_call.1} parent=5 // pred_check
        _
      $region10: #{tpu_custom_call.1} parent=5 // pred_check_branch
        %258 = sbr.rel (%p255) target = $region12
      $region11: #{tpu_custom_call.1} parent=5 // pred_region
        %s259 = ssub.s32 %s20, 1
        // Predicated region
        $region13: #{tpu_custom_call.1} parent=11 // pred_check
          %p260 = pneg %p93
        $region14: #{tpu_custom_call.1} parent=11 // pred_check_branch
          %262 = sbr.rel (%p260) target = $region16
        $region15: #{tpu_custom_call.1} parent=11 // pred_region
          _
        $region16: #{tpu_custom_call.1} parent=11 // pred_fallthru
          _
        // Predicated region
        $region17: #{tpu_custom_call.1} parent=11 // pred_check
          %p263 = pneg %p114
        $region18: #{tpu_custom_call.1} parent=11 // pred_check_branch
          %265 = sbr.rel (%p263) target = $region20
        $region19: #{tpu_custom_call.1} parent=11 // pred_region
          _
        $region20: #{tpu_custom_call.1} parent=11 // pred_fallthru
          _
        // Predicated region
        $region21: #{tpu_custom_call.1} parent=11 // pred_check
          %p266 = pneg %p135
        $region22: #{tpu_custom_call.1} parent=11 // pred_check_branch
          %268 = sbr.rel (%p266) target = $region24
        $region23: #{tpu_custom_call.1} parent=11 // pred_region
          _
        $region24: #{tpu_custom_call.1} parent=11 // pred_fallthru
          _
        // Predicated region
        $region25: #{tpu_custom_call.1} parent=11 // pred_check
          %p269 = pneg %p156
        $region26: #{tpu_custom_call.1} parent=11 // pred_check_branch
          %271 = sbr.rel (%p269) target = $region28
        $region27: #{tpu_custom_call.1} parent=11 // pred_region
          _
        $region28: #{tpu_custom_call.1} parent=11 // pred_fallthru
          _
        // Predicated region
        $region29: #{tpu_custom_call.1} parent=11 // pred_check
          %p272 = pneg %p177
        $region30: #{tpu_custom_call.1} parent=11 // pred_check_branch
          %274 = sbr.rel (%p272) target = $region32
        $region31: #{tpu_custom_call.1} parent=11 // pred_region
          _
        $region32: #{tpu_custom_call.1} parent=11 // pred_fallthru
          _
        // Predicated region
        $region33: #{tpu_custom_call.1} parent=11 // pred_check
          %p275 = pneg %p198
        $region34: #{tpu_custom_call.1} parent=11 // pred_check_branch
          %277 = sbr.rel (%p275) target = $region36
        $region35: #{tpu_custom_call.1} parent=11 // pred_region
          _
        $region36: #{tpu_custom_call.1} parent=11 // pred_fallthru
          _
        // Predicated region
        $region37: #{tpu_custom_call.1} parent=11 // pred_check
          %p278 = pneg %p219
        $region38: #{tpu_custom_call.1} parent=11 // pred_check_branch
          %280 = sbr.rel (%p278) target = $region40
        $region39: #{tpu_custom_call.1} parent=11 // pred_region
          _
        $region40: #{tpu_custom_call.1} parent=11 // pred_fallthru
          _
      $region12: #{tpu_custom_call.1} parent=5 // pred_fallthru
        _
      %p281 = scmp.lt.s32.totalorder %s20, 3
      // Predicated region
      $region41: #{tpu_custom_call.1} parent=5 // pred_check
        %p282 = pneg %p281
      $region42: #{tpu_custom_call.1} parent=5 // pred_check_branch
        %284 = sbr.rel (%p282) target = $region44
      $region43: #{tpu_custom_call.1} parent=5 // pred_region
        // Predicated region
        $region45: #{tpu_custom_call.1} parent=43 // pred_check
          %p285 = pneg %p40
        $region46: #{tpu_custom_call.1} parent=43 // pred_check_branch
          %287 = sbr.rel (%p285) target = $region48
        $region47: #{tpu_custom_call.1} parent=43 // pred_region
          %s288 = sand.u32 %s30, 1
          %s289 = sand.u32 %s30, 1
          %s290 = smul.addr %s289, 16
          %s291 = scalar_lea.vmem [#allocation3], %s290
          %s292 = smul.addr %s20, 8
          %s293 = scalar_lea.vmem %s0, %s292
          // Predicated region
          $region49: #{tpu_custom_call.1} parent=47 // pred_check
            _
          $region50: #{tpu_custom_call.1} parent=47 // pred_check_branch
            %295 = sbr.rel (0) target = $region52
          $region51: #{tpu_custom_call.1} parent=47 // pred_region
            // Predicated region
            $region53: #{tpu_custom_call.1} parent=51 // pred_check
              _
            $region54: #{tpu_custom_call.1} parent=51 // pred_check_branch
              %297 = sbr.rel (0) target = $region56
            $region55: #{tpu_custom_call.1} parent=51 // pred_region
              // Predicated region
              $region68: #{tpu_custom_call.1} parent=55 // pred_check
                _
              $region69: #{tpu_custom_call.1} parent=55 // pred_check_branch
                %315 = sbr.rel (0) target = $region71
              $region70: #{tpu_custom_call.1} parent=55 // pred_region
                loop: start=0, step=1, limit=1
                $region72: #{tpu_custom_call.1} parent=70 // loop_pre_header
                  _
                $region73: #{tpu_custom_call.1} parent=70 // loop_header
                  %s317 = sphi 0, %s321
                  %p318 = scmp.ge.s32.totalorder %s317, 1
                  %s322 = sphi %s293, %s293
                  %s323 = sphi %s291, %s291
                $region74: #{tpu_custom_call.1} parent=70 // loop_header_branch
                  %320 = sbr.rel (%p318) target = $region78
                $region75: #{tpu_custom_call.1} parent=70 // loop_body
                  %v324 = vld [vmem:[%s322] sm:$0xff]
                  %325 = vst [vmem:[%s323] sm:$0xff] %v324
                  %v326 = vld [vmem:[%s322 + $0x18] sm:$0xff]
                  %327 = vst [vmem:[%s323 + $0x8] sm:$0xff] %v326
                $region76: #{tpu_custom_call.1} parent=70 // loop_footer
                  %s321 = sadd.s32 1, %s317
                $region77: #{tpu_custom_call.1} parent=70 // loop_footer_branch
                  %316 = sbr.rel target = $region73
                $region78: #{tpu_custom_call.1} parent=70 // loop_exit
                  _
              $region71: #{tpu_custom_call.1} parent=55 // pred_fallthru
                _
              // Predicated region
              $region79: #{tpu_custom_call.1} parent=55 // pred_check
                _
              $region80: #{tpu_custom_call.1} parent=55 // pred_check_branch
                %329 = sbr.rel target = $region82
              $region81: #{tpu_custom_call.1} parent=55 // pred_region
                _
              $region82: #{tpu_custom_call.1} parent=55 // pred_fallthru
                _
            $region56: #{tpu_custom_call.1} parent=51 // pred_fallthru
              _
            // Predicated region
            $region57: #{tpu_custom_call.1} parent=51 // pred_check
              _
            $region58: #{tpu_custom_call.1} parent=51 // pred_check_branch
              %299 = sbr.rel target = $region60
            $region59: #{tpu_custom_call.1} parent=51 // pred_region
              %s301 = ssub.s32 256, 1
              loop: start=0, step=1, limit=1
              $region61: #{tpu_custom_call.1} parent=59 // loop_pre_header
                _
              $region62: #{tpu_custom_call.1} parent=59 // loop_header
                %s303 = sphi 0, %s307
                %p304 = scmp.ge.s32.totalorder %s303, 1
                %s308 = sphi %s293, %s293
                %s309 = sphi %s291, %s291
              $region63: #{tpu_custom_call.1} parent=59 // loop_header_branch
                %306 = sbr.rel (%p304) target = $region67
              $region64: #{tpu_custom_call.1} parent=59 // loop_body
                %v310 = vld [vmem:[%s308] sm:%s301]
                %311 = vst [vmem:[%s309] sm:%s301] %v310
                %v312 = vld [vmem:[%s308 + $0x18] sm:%s301]
                %313 = vst [vmem:[%s309 + $0x8] sm:%s301] %v312
              $region65: #{tpu_custom_call.1} parent=59 // loop_footer
                %s307 = sadd.s32 1, %s303
              $region66: #{tpu_custom_call.1} parent=59 // loop_footer_branch
                %302 = sbr.rel target = $region62
              $region67: #{tpu_custom_call.1} parent=59 // loop_exit
                _
            $region60: #{tpu_custom_call.1} parent=51 // pred_fallthru
              _
          $region52: #{tpu_custom_call.1} parent=47 // pred_fallthru
            _
          %330 = vnop
        $region48: #{tpu_custom_call.1} parent=43 // pred_fallthru
          _
        // Predicated region
        $region83: #{tpu_custom_call.1} parent=43 // pred_check
          %p331 = pneg %p66
        $region84: #{tpu_custom_call.1} parent=43 // pred_check_branch
          %333 = sbr.rel (%p331) target = $region86
        $region85: #{tpu_custom_call.1} parent=43 // pred_region
          %s334 = sand.u32 %s56, 1
          %s335 = sand.u32 %s56, 1
          %s336 = smul.addr %s335, 16
          %s337 = scalar_lea.vmem [#allocation4], %s336
          %s338 = smul.addr %s20, 8
          %s339 = scalar_lea.vmem %s1, %s338
          // Predicated region
          $region87: #{tpu_custom_call.1} parent=85 // pred_check
            _
          $region88: #{tpu_custom_call.1} parent=85 // pred_check_branch
            %341 = sbr.rel (0) target = $region90
          $region89: #{tpu_custom_call.1} parent=85 // pred_region
            // Predicated region
            $region91: #{tpu_custom_call.1} parent=89 // pred_check
              _
            $region92: #{tpu_custom_call.1} parent=89 // pred_check_branch
              %343 = sbr.rel (0) target = $region94
            $region93: #{tpu_custom_call.1} parent=89 // pred_region
              // Predicated region
              $region106: #{tpu_custom_call.1} parent=93 // pred_check
                _
              $region107: #{tpu_custom_call.1} parent=93 // pred_check_branch
                %361 = sbr.rel (0) target = $region109
              $region108: #{tpu_custom_call.1} parent=93 // pred_region
                loop: start=0, step=1, limit=1
                $region110: #{tpu_custom_call.1} parent=108 // loop_pre_header
                  _
                $region111: #{tpu_custom_call.1} parent=108 // loop_header
                  %s363 = sphi 0, %s367
                  %p364 = scmp.ge.s32.totalorder %s363, 1
                  %s368 = sphi %s339, %s339
                  %s369 = sphi %s337, %s337
                $region112: #{tpu_custom_call.1} parent=108 // loop_header_branch
                  %366 = sbr.rel (%p364) target = $region116
                $region113: #{tpu_custom_call.1} parent=108 // loop_body
                  %v370 = vld [vmem:[%s368] sm:$0xff]
                  %371 = vst [vmem:[%s369] sm:$0xff] %v370
                  %v372 = vld [vmem:[%s368 + $0x18] sm:$0xff]
                  %373 = vst [vmem:[%s369 + $0x8] sm:$0xff] %v372
                $region114: #{tpu_custom_call.1} parent=108 // loop_footer
                  %s367 = sadd.s32 1, %s363
                $region115: #{tpu_custom_call.1} parent=108 // loop_footer_branch
                  %362 = sbr.rel target = $region111
                $region116: #{tpu_custom_call.1} parent=108 // loop_exit
                  _
              $region109: #{tpu_custom_call.1} parent=93 // pred_fallthru
                _
              // Predicated region
              $region117: #{tpu_custom_call.1} parent=93 // pred_check
                _
              $region118: #{tpu_custom_call.1} parent=93 // pred_check_branch
                %375 = sbr.rel target = $region120
              $region119: #{tpu_custom_call.1} parent=93 // pred_region
                _
              $region120: #{tpu_custom_call.1} parent=93 // pred_fallthru
                _
            $region94: #{tpu_custom_call.1} parent=89 // pred_fallthru
              _
            // Predicated region
            $region95: #{tpu_custom_call.1} parent=89 // pred_check
              _
            $region96: #{tpu_custom_call.1} parent=89 // pred_check_branch
              %345 = sbr.rel target = $region98
            $region97: #{tpu_custom_call.1} parent=89 // pred_region
              %s347 = ssub.s32 256, 1
              loop: start=0, step=1, limit=1
              $region99: #{tpu_custom_call.1} parent=97 // loop_pre_header
                _
              $region100: #{tpu_custom_call.1} parent=97 // loop_header
                %s349 = sphi 0, %s353
                %p350 = scmp.ge.s32.totalorder %s349, 1
                %s354 = sphi %s339, %s339
                %s355 = sphi %s337, %s337
              $region101: #{tpu_custom_call.1} parent=97 // loop_header_branch
                %352 = sbr.rel (%p350) target = $region105
              $region102: #{tpu_custom_call.1} parent=97 // loop_body
                %v356 = vld [vmem:[%s354] sm:%s347]
                %357 = vst [vmem:[%s355] sm:%s347] %v356
                %v358 = vld [vmem:[%s354 + $0x18] sm:%s347]
                %359 = vst [vmem:[%s355 + $0x8] sm:%s347] %v358
              $region103: #{tpu_custom_call.1} parent=97 // loop_footer
                %s353 = sadd.s32 1, %s349
              $region104: #{tpu_custom_call.1} parent=97 // loop_footer_branch
                %348 = sbr.rel target = $region100
              $region105: #{tpu_custom_call.1} parent=97 // loop_exit
                _
            $region98: #{tpu_custom_call.1} parent=89 // pred_fallthru
              _
          $region90: #{tpu_custom_call.1} parent=85 // pred_fallthru
            _
          %376 = vnop
        $region86: #{tpu_custom_call.1} parent=43 // pred_fallthru
          _
      $region44: #{tpu_custom_call.1} parent=5 // pred_fallthru
        _
      %p377 = scmp.le.s32.totalorder 1, %s20
      %p378 = scmp.lt.s32.totalorder %s20, 4
      %p379 = pnand %p377, %p378
      %p380 = pneg %p379
      // Predicated region
      $region121: #{tpu_custom_call.1} parent=5 // pred_check
        _
      $region122: #{tpu_custom_call.1} parent=5 // pred_check_branch
        %382 = sbr.rel (%p379) target = $region124
      $region123: #{tpu_custom_call.1} parent=5 // pred_region
        %s383 = ssub.s32 %s20, 1
        %s384 = sand.u32 %s33, 1
        %s385 = sand.u32 %s33, 1
        %s386 = smul.addr %s385, 16
        %s387 = scalar_lea.vmem [#allocation3], %s386
        // Predicated region
        $region125: #{tpu_custom_call.1} parent=123 // pred_check
          %p388 = pneg %p46
        $region126: #{tpu_custom_call.1} parent=123 // pred_check_branch
          %390 = sbr.rel (%p388) target = $region128
        $region127: #{tpu_custom_call.1} parent=123 // pred_region
          _
        $region128: #{tpu_custom_call.1} parent=123 // pred_fallthru
          _
        %s391 = sand.u32 %s59, 1
        %s392 = sand.u32 %s59, 1
        %s393 = smul.addr %s392, 16
        %s394 = scalar_lea.vmem [#allocation4], %s393
        // Predicated region
        $region129: #{tpu_custom_call.1} parent=123 // pred_check
          %p395 = pneg %p72
        $region130: #{tpu_custom_call.1} parent=123 // pred_check_branch
          %397 = sbr.rel (%p395) target = $region132
        $region131: #{tpu_custom_call.1} parent=123 // pred_region
          _
        $region132: #{tpu_custom_call.1} parent=123 // pred_fallthru
          _
        %s398 = sand.u32 %s33, 1
        %s399 = sand.u32 %s33, 1
        %s400 = smul.addr %s399, 16
        %s401 = scalar_lea.vmem [#allocation3], %s400
        %p402 = pneg %p46
        %p403 = pneg %p43
        %s404 = sand.u32 %s59, 1
        %s405 = sand.u32 %s59, 1
        %s406 = smul.addr %s405, 16
        %s407 = scalar_lea.vmem [#allocation4], %s406
        %p408 = pneg %p72
        %p409 = pneg %p69
        %p410 = pneg %p93
        %p411 = pneg %p90
        %p412 = pneg %p114
        %p413 = pneg %p111
        %p414 = pneg %p135
        %p415 = pneg %p132
        %p416 = pneg %p156
        %p417 = pneg %p153
        %p418 = pneg %p177
        %p419 = pneg %p174
        %p420 = pneg %p198
        %p421 = pneg %p195
        %p422 = pneg %p219
        %p423 = pneg %p216
        %p424 = pneg %p245
        %p425 = pneg %p242
        %s426 = sand.u32 %s232, 1
        %s427 = scalar_lea.sflag [#allocation6], %s426
        %s428 = sand.u32 %s232, 1
        %s429 = scalar_lea.vmem [#allocation5], %s428
        %v430 = vld [vmem:[%s2] sm:$0xff]
        %v431 = vld [vmem:[%s2 + $0x8] sm:$0xff]
        %v432 = vld [vmem:[%s2 + $0x10] sm:$0xff]
        %v433 = vld [vmem:[%s2 + $0x18] sm:$0xff]
        %v434 = vld [vmem:[%s3] sm:$0xff]
        %v435 = vld [vmem:[%s3 + $0x8] sm:$0xff]
        %v436 = vld [vmem:[%s3 + $0x10] sm:$0xff]
        %v437 = vld [vmem:[%s3 + $0x18] sm:$0xff]
        %v438 = vld [vmem:[%s4] sm:$0xff]
        %v439 = vld [vmem:[%s4 + $0x8] sm:$0xff]
        %v440 = vld [vmem:[%s4 + $0x10] sm:$0xff]
        %v441 = vld [vmem:[%s4 + $0x18] sm:$0xff]
        %v442 = vld [vmem:[%s387] sm:$0xff]
        %v443 = vld [vmem:[%s387 + $0x8] sm:$0xff]
        %v444 = vld [vmem:[%s394] sm:$0xff]
        %v445 = vld [vmem:[%s394 + $0x8] sm:$0xff]
        %vm446 = vcmask 130048
        %v448 = vsel %vm446, %v434, 0
        %v451 = vsel %vm446, %v435, 0
        %v454 = vsel %vm446, %v436, 0
        %v457 = vsel %vm446, %v437, 0
        %459 = vmatpush.msra.mxu0 0.0
        %460 = vmatpush.msra.mxu0 0.0
        %461 = vmatpush.msra.mxu0 0.0
        %462 = vmatpush.msra.mxu0 0.0
        %463 = vmatpush.msra.mxu0 0.0
        %464 = vmatpush.msra.mxu0 0.0
        %465 = vmatpush.msra.mxu0 0.0
        %466 = vmatpush.msra.mxu0 0.0
        %467 = vmatpush.msra.mxu0 0.0
        %468 = vmatpush.msra.mxu0 0.0
        %469 = vmatpush.msra.mxu0 0.0
        %470 = vmatpush.msra.mxu0 0.0
        %471 = vmatpush.msra.mxu0 0.0
        %472 = vmatpush.msra.mxu0 0.0
        %473 = vmatpush.msra.mxu0 %v445
        %474 = vmatpush.msra.mxu0 %v444
        %475 = vmatmul.f32.gmra.mxu0 %v448
        %v476 = vpop.f32.mrf.mxu0
        %v477 = vadd.f32 0.0, %v476
        %478 = vmatmul.f32.gmra.mxu0 %v451
        %v479 = vpop.f32.mrf.mxu0
        %v480 = vadd.f32 0.0, %v479
        %481 = vmatmul.f32.gmra.mxu0 %v454
        %v482 = vpop.f32.mrf.mxu0
        %v483 = vadd.f32 0.0, %v482
        %484 = vmatmul.f32.gmra.mxu0 %v457
        %v485 = vpop.f32.mrf.mxu0
        %v486 = vadd.f32 0.0, %v485
        %487 = vdwg.mxu0
        %v489 = vsel %vm446, %v430, 0
        %v492 = vsel %vm446, %v431, 0
        %v495 = vsel %vm446, %v432, 0
        %v498 = vsel %vm446, %v433, 0
        %500 = vmatpush.msra.mxu0 0.0
        %501 = vmatpush.msra.mxu0 0.0
        %502 = vmatpush.msra.mxu0 0.0
        %503 = vmatpush.msra.mxu0 0.0
        %504 = vmatpush.msra.mxu0 0.0
        %505 = vmatpush.msra.mxu0 0.0
        %506 = vmatpush.msra.mxu0 0.0
        %507 = vmatpush.msra.mxu0 0.0
        %508 = vmatpush.msra.mxu0 0.0
        %509 = vmatpush.msra.mxu0 0.0
        %510 = vmatpush.msra.mxu0 0.0
        %511 = vmatpush.msra.mxu0 0.0
        %512 = vmatpush.msra.mxu0 0.0
        %513 = vmatpush.msra.mxu0 0.0
        %514 = vmatpush.msra.mxu0 %v443
        %515 = vmatpush.msra.mxu0 %v442
        %516 = vmatmul.f32.gmra.mxu0 %v489
        %v517 = vpop.f32.mrf.mxu0
        %v518 = vadd.f32 %v477, %v517
        %519 = vmatmul.f32.gmra.mxu0 %v492
        %v520 = vpop.f32.mrf.mxu0
        %v521 = vadd.f32 %v480, %v520
        %522 = vmatmul.f32.gmra.mxu0 %v495
        %v523 = vpop.f32.mrf.mxu0
        %v524 = vadd.f32 %v483, %v523
        %525 = vmatmul.f32.gmra.mxu0 %v498
        %v526 = vpop.f32.mrf.mxu0
        %v527 = vadd.f32 %v486, %v526
        %528 = vdwg.mxu0
        %530 = vset.pattern.permute.xlu0 0
        %531 = vperm.xlu0 %530, %v438
        %v532 = vpop.permute.xlu0 %531
        %535 = vset.pattern.permute.xlu0 0
        %536 = vperm.xlu0 %535, %v439
        %v537 = vpop.permute.xlu0 %536
        %540 = vset.pattern.permute.xlu0 0
        %541 = vperm.xlu0 %540, %v440
        %v542 = vpop.permute.xlu0 %541
        %545 = vset.pattern.permute.xlu0 0
        %546 = vperm.xlu0 %545, %v441
        %v547 = vpop.permute.xlu0 %546
        %v549 = vadd.f32 %v518, %v532
        %v550 = vadd.f32 %v521, %v537
        %v551 = vadd.f32 %v524, %v542
        %v552 = vadd.f32 %v527, %v547
        %v553 = vmax.f32 %v549, 0.0
        %v554 = vmax.f32 %v550, 0.0
        %v555 = vmax.f32 %v551, 0.0
        %v556 = vmax.f32 %v552, 0.0
        %v557 = vld [vmem:[%s5] sm:$0xff]
        %v558 = vld [vmem:[%s5 + $0x8] sm:$0xff]
        %v559 = vld [vmem:[%s6] sm:$0xff]
        %v560 = vld [vmem:[%s6 + $0x8] sm:$0xff]
        %562 = vset.pattern.permute.xlu0 0
        %563 = vperm.xlu0 %562, %v559
        %v564 = vpop.permute.xlu0 %563
        %567 = vset.pattern.permute.xlu0 0
        %568 = vperm.xlu0 %567, %v560
        %v569 = vpop.permute.xlu0 %568
        %vm571 = vcmask 261120
        %v573 = vsel %vm571, %v557, 0
        %v576 = vsel %vm571, %v558, 0
        %578 = vmatpush.msra.mxu0 0.0
        %579 = vmatpush.msra.mxu0 0.0
        %580 = vmatpush.msra.mxu0 0.0
        %581 = vmatpush.msra.mxu0 0.0
        %582 = vmatpush.msra.mxu0 0.0
        %583 = vmatpush.msra.mxu0 0.0
        %584 = vmatpush.msra.mxu0 0.0
        %585 = vmatpush.msra.mxu0 0.0
        %586 = vmatpush.msra.mxu0 0.0
        %587 = vmatpush.msra.mxu0 0.0
        %588 = vmatpush.msra.mxu0 0.0
        %589 = vmatpush.msra.mxu0 0.0
        %590 = vmatpush.msra.mxu0 %v556
        %591 = vmatpush.msra.mxu0 %v555
        %592 = vmatpush.msra.mxu0 %v554
        %593 = vmatpush.msra.mxu0 %v553
        %594 = vmatmul.f32.gmra.mxu0 %v573
        %v595 = vpop.f32.mrf.mxu0
        %v596 = vadd.f32 %v564, %v595
        %597 = vmatmul.f32.gmra.mxu0 %v576
        %v598 = vpop.f32.mrf.mxu0
        %v599 = vadd.f32 %v569, %v598
        %600 = vdwg.mxu0
        %v601 = vmax.f32 %v596, 0.0
        %v602 = vmax.f32 %v599, 0.0
        %v603 = vld [vmem:[%s7] sm:$0x1]
        %v604 = vld [vmem:[#allocation2] sm:$0x1]
        %606 = vset.pattern.permute.xlu0 0
        %607 = vperm.xlu0 %606, %v604
        %v608 = vpop.permute.xlu0 %607
        %v610 = vperm.slane %v608, 0
        %v612 = vsel %vm446, %v603, 0
        %614 = vmatpush.msra.mxu0 0.0
        %615 = vmatpush.msra.mxu0 0.0
        %616 = vmatpush.msra.mxu0 0.0
        %617 = vmatpush.msra.mxu0 0.0
        %618 = vmatpush.msra.mxu0 0.0
        %619 = vmatpush.msra.mxu0 0.0
        %620 = vmatpush.msra.mxu0 0.0
        %621 = vmatpush.msra.mxu0 0.0
        %622 = vmatpush.msra.mxu0 0.0
        %623 = vmatpush.msra.mxu0 0.0
        %624 = vmatpush.msra.mxu0 0.0
        %625 = vmatpush.msra.mxu0 0.0
        %626 = vmatpush.msra.mxu0 0.0
        %627 = vmatpush.msra.mxu0 0.0
        %628 = vmatpush.msra.mxu0 %v602
        %629 = vmatpush.msra.mxu0 %v601
        %630 = vmatmul.f32.gmra.mxu0 %v612
        %v631 = vpop.f32.mrf.mxu0
        %v632 = vadd.f32 %v610, %v631
        %633 = vdwg.mxu0
        %v634 = vsub.f32 0.0, %v632
        %v635 = vmul.f32 %v634, 1.442695
        %v636 = vpow.pop %v635
        %v637 = vadd.f32 %v636, 1.0
        %v638 = vrcp.pop %v637
        %v639 = vmul.f32 %v637, %v638
        %v640 = vsub.f32 1.0, %v639
        %v641 = vmul.f32 %v638, %v640
        %v642 = vadd.f32 %v638, %v641
        %vm643 = vweird.f32 %v637
        %vm644 = vweird.f32 %v638
        %vm645 = vmor %vm643, %vm644
        %v646 = vsel %vm645, %v638, %v642
        %v647 = vand.u32 2147483647, %v637
        %vm648 = vcmp.eq.f32.partialorder %v647, 8.507059e+37
        %v649 = vand.u32 %v637, 2147483648
        %v650 = vor.u32 1.1754944e-38, %v649
        %v651 = vsel %vm648, %v650, %v646
        %v652 = vmul.f32 1.0, %v651
        %653 = vst [vmem:[%s429] sm:$0x1] %v652
        %s654 = sand.u32 %s232, 1
        %s655 = scalar_lea.sflag [#allocation6], %s654
        %s656 = sand.u32 %s232, 1
        %s657 = scalar_lea.vmem [#allocation5], %s656
        // Predicated region
        $region133: #{tpu_custom_call.1} parent=123 // pred_check
          %p658 = pneg %p242
        $region134: #{tpu_custom_call.1} parent=123 // pred_check_branch
          %660 = sbr.rel (%p658) target = $region136
        $region135: #{tpu_custom_call.1} parent=123 // pred_region
          %662 = vsyncadd %s655, 0
          %s663 = scalar_lea.hbm %s9, %s25
          %s665 = sshll.u32 %s657, 4
          %s666 = int_to_ptr.vmem [resolvable:$true] %s665
          %s667 = sshll.u32 %s663, 4
          %s668 = int_to_ptr.hbm [resolvable:$true] %s667
          %670 = dma.vmem_to_hbm [thread:$0]  %s666, 16, %s668, %s655
        $region136: #{tpu_custom_call.1} parent=123 // pred_fallthru
          _
      $region124: #{tpu_custom_call.1} parent=5 // pred_fallthru
        _
      %p671 = scmp.le.s32.totalorder 2, %s20
      // Predicated region
      $region137: #{tpu_custom_call.1} parent=5 // pred_check
        %p672 = pneg %p671
      $region138: #{tpu_custom_call.1} parent=5 // pred_check_branch
        %674 = sbr.rel (%p672) target = $region140
      $region139: #{tpu_custom_call.1} parent=5 // pred_region
        %s675 = ssub.s32 %s20, 2
        // Predicated region
        $region141: #{tpu_custom_call.1} parent=139 // pred_check
          %p676 = pneg %p248
        $region142: #{tpu_custom_call.1} parent=139 // pred_check_branch
          %678 = sbr.rel (%p676) target = $region144
        $region143: #{tpu_custom_call.1} parent=139 // pred_region
          %s679 = sand.u32 %s233, 1
          %s680 = scalar_lea.sflag [#allocation6], %s679
          %s681 = sand.u32 %s233, 1
          %s682 = scalar_lea.vmem [#allocation5], %s681
          %684 = dma.done %s680, 16
        $region144: #{tpu_custom_call.1} parent=139 // pred_fallthru
          _
      $region140: #{tpu_custom_call.1} parent=5 // pred_fallthru
        _
    $region6: #{tpu_custom_call.1} parent=1 // loop_footer
      %s24 = sadd.s32 1, %s20
    $region7: #{tpu_custom_call.1} parent=1 // loop_footer_branch
      %19 = sbr.rel target = $region3
    $region8: #{tpu_custom_call.1} parent=1 // loop_exit
      _
    %685 = vsyncpa [#allocation6], 1
    %s686 = scalar_lea.sflag [#allocation6], 1
    %687 = vsyncpa %s686, 1

</llo_original>
